<compile_context>
chip_gen: v5e
topology: v5e:2x2
jax: 0.10.0
libtpu: 0.0.40
codegen_flags: <defaults>
</compile_context>

<pallas_src>
import functools

import jax
import jax.numpy as jnp
from jax.experimental import pallas as pl
from jax.experimental.pallas import tpu as pltpu


def _conv_bn_relu_kernel(w_ref, p_ref, gamma_ref, beta_ref, o_ref, *, eps, inv_rows):
    # Conv as matmul on im2col patches, lane-dense orientation:
    #   [C_out, K] @ [K, R] -> [C_out, R]   (R = N*OH*OW on the 128-lane axis)
    y = jnp.dot(w_ref[...], p_ref[...], preferred_element_type=jnp.float32)

    # BatchNorm2d (train mode): per-output-channel mean / biased variance over
    # the R axis (which enumerates the N, H, W reduction axes of BatchNorm2d).
    # Single pass: E[y] and E[y^2]; cross-lane reduce runs on the XLU.
    mean = jnp.sum(y, axis=-1, keepdims=True) * inv_rows         # [C_out, 1]
    mean_sq = jnp.sum(y * y, axis=-1, keepdims=True) * inv_rows  # [C_out, 1]
    var = mean_sq - mean * mean                                  # biased variance

    # Fold gamma/beta into a per-channel scale/shift -> one FMA per element.
    scale = gamma_ref[...] * jax.lax.rsqrt(var + eps)            # [C_out, 1]
    shift = beta_ref[...] - mean * scale                         # [C_out, 1]

    o_ref[...] = jnp.maximum(y * scale + shift, 0.0)             # ReLU


def _im2col_nhwc(x_nhwc, kh, kw, stride, pad):
    """Extract conv patches. Returns ([N*OH*OW, KH*KW*C_in], OH, OW)."""
    x_p = jnp.pad(x_nhwc, ((0, 0), (pad, pad), (pad, pad), (0, 0)))
    n, hp, wp, c = x_p.shape
    oh = (hp - kh) // stride + 1
    ow = (wp - kw) // stride + 1
    slabs = []
    for i in range(kh):
        for j in range(kw):
            slabs.append(x_p[:, i:i + (oh - 1) * stride + 1:stride,
                             j:j + (ow - 1) * stride + 1:stride, :])
    # [N, OH, OW, KH*KW, C_in] -> [N*OH*OW, KH*KW*C_in]   (K ordered as kh, kw, c_in)
    p = jnp.stack(slabs, axis=3)
    return p.reshape(n * oh * ow, kh * kw * c), oh, ow


def basic_conv2d(x_nchw, weight, gamma, beta, *, stride, padding, eps=1e-3):
    """Forward pass of BasicConv2d.

    x_nchw: [N, C_in, H, W]
    weight: [C_out, C_in, KH, KW]  (PyTorch Conv2d layout, bias=False)
    gamma, beta: [C_out]           (BatchNorm2d affine params)
    returns: [N, C_out, OH, OW]
    """
    x_nchw = x_nchw.astype(jnp.float32)
    n, c_in, h, w = x_nchw.shape
    c_out, _, kh, kw = weight.shape

    x_nhwc = jnp.transpose(x_nchw, (0, 2, 3, 1))
    patches_rk, oh, ow = _im2col_nhwc(x_nhwc, kh, kw, stride, padding)   # [R, K]
    rows = n * oh * ow
    k = kh * kw * c_in

    # Lane-dense operands: R goes on the last (lane) axis of every big array.
    patches_kr = patches_rk.T                                            # [K, R]
    # Match K ordering (kh, kw, c_in): weight [C_out, C_in, KH, KW] -> [C_out, K]
    w_ck = jnp.transpose(weight.astype(jnp.float32), (0, 2, 3, 1)).reshape(c_out, k)
    gamma_c1 = gamma.astype(jnp.float32).reshape(c_out, 1)
    beta_c1 = beta.astype(jnp.float32).reshape(c_out, 1)

    vmem = pl.BlockSpec(memory_space=pltpu.MemorySpace.VMEM)
    out_cr = pl.pallas_call(
        functools.partial(_conv_bn_relu_kernel, eps=eps, inv_rows=1.0 / rows),
        out_shape=jax.ShapeDtypeStruct((c_out, rows), jnp.float32),
        in_specs=[vmem, vmem, vmem, vmem],
        out_specs=vmem,
        compiler_params=pltpu.CompilerParams(vmem_limit_bytes=64 * 1024 * 1024),
    )(w_ck, patches_kr, gamma_c1, beta_c1)

    # R enumerates (n, oh, ow) row-major -> back to NCHW.
    out = out_cr.reshape(c_out, n, oh, ow)
    return jnp.transpose(out, (1, 0, 2, 3))


def _reference(x_nchw, weight, gamma, beta, *, stride, padding, eps=1e-3):
    """Pure-JAX reference (conv + train-mode BN + ReLU) for verification."""
    y = jax.lax.conv_general_dilated(
        x_nchw.astype(jnp.float32), weight.astype(jnp.float32),
        window_strides=(stride, stride),
        padding=[(padding, padding), (padding, padding)],
        dimension_numbers=("NCHW", "OIHW", "NCHW"))
    mean = jnp.mean(y, axis=(0, 2, 3), keepdims=True)
    var = jnp.mean((y - mean) ** 2, axis=(0, 2, 3), keepdims=True)
    y = (y - mean) * jax.lax.rsqrt(var + eps)
    y = y * gamma.reshape(1, -1, 1, 1) + beta.reshape(1, -1, 1, 1)
    return jnp.maximum(y, 0.0)


if __name__ == "__main__":
    # BasicConv2d(in_planes=4, out_planes=8, kernel_size=3, stride=1, padding=1)
    N, C_IN, H, W = 2, 4, 16, 16
    C_OUT, KS, STRIDE, PAD = 8, 3, 1, 1

    key = jax.random.PRNGKey(0)
    kx, kw = jax.random.split(key)
    x = jax.random.normal(kx, (N, C_IN, H, W), dtype=jnp.float32)
    # Conv2d default init scale ~ 1/sqrt(fan_in); deterministic synthetic weights.
    fan_in = C_IN * KS * KS
    weight = jax.random.normal(kw, (C_OUT, C_IN, KS, KS), dtype=jnp.float32) / jnp.sqrt(fan_in)
    # BatchNorm2d default affine init: gamma=1, beta=0.
    gamma = jnp.ones((C_OUT,), dtype=jnp.float32)
    beta = jnp.zeros((C_OUT,), dtype=jnp.float32)

    out = basic_conv2d(x, weight, gamma, beta, stride=STRIDE, padding=PAD)
    out = jax.block_until_ready(out)

    ref = _reference(x, weight, gamma, beta, stride=STRIDE, padding=PAD)
    assert out.shape == (N, C_OUT, H, W), out.shape
    assert jnp.allclose(out, ref, atol=1e-4, rtol=1e-4), float(jnp.max(jnp.abs(out - ref)))

    print("KERNEL_OK")
</pallas_src>

<mosaic_0001>
module attributes {stable_mosaic.version = 11 : i64} {
  func.func @_conv_bn_relu_kernel(%arg0: memref<8x36xf32, #tpu.memory_space<vmem>>, %arg1: memref<36x512xf32, #tpu.memory_space<vmem>>, %arg2: memref<8x1xf32, #tpu.memory_space<vmem>>, %arg3: memref<8x1xf32, #tpu.memory_space<vmem>>, %arg4: memref<8x512xf32, #tpu.memory_space<vmem>>) attributes {dimension_semantics = [], scalar_prefetch = 0 : i64, scratch_operands = 0 : i64, tpu.core_type = #tpu.core_type<tc>} {
    %c0 = arith.constant 0 : index
    %c0_0 = arith.constant 0 : index
    %0 = vector.load %arg0[%c0, %c0_0] : memref<8x36xf32, #tpu.memory_space<vmem>>, vector<8x36xf32>
    %c0_1 = arith.constant 0 : index
    %c0_2 = arith.constant 0 : index
    %1 = vector.load %arg1[%c0_1, %c0_2] : memref<36x512xf32, #tpu.memory_space<vmem>>, vector<36x512xf32>
    %cst = arith.constant dense<0.000000e+00> : vector<8x512xf32>
    %2 = tpu.matmul %0, %1, %cst {dimension_numbers = #tpu.dot_dimension_numbers<[1], [0], [0], [1], [0, 0, 1, 1], [], []>} : vector<8x36xf32>, vector<36x512xf32>, vector<8x512xf32> -> vector<8x512xf32>
    %cst_3 = arith.constant dense<0.000000e+00> : vector<8xf32>
    %3 = vector.multi_reduction <add>, %2, %cst_3 [1] : vector<8x512xf32> to vector<8xf32>
    %4 = vector.shape_cast %3 : vector<8xf32> to vector<8x1xf32>
    %cst_4 = arith.constant 0.001953125 : f32
    %5 = vector.broadcast %cst_4 : f32 to vector<8x1xf32>
    %6 = arith.mulf %4, %5 : vector<8x1xf32>
    %7 = arith.mulf %2, %2 : vector<8x512xf32>
    %cst_5 = arith.constant dense<0.000000e+00> : vector<8xf32>
    %8 = vector.multi_reduction <add>, %7, %cst_5 [1] : vector<8x512xf32> to vector<8xf32>
    %9 = vector.shape_cast %8 : vector<8xf32> to vector<8x1xf32>
    %cst_6 = arith.constant 0.001953125 : f32
    %10 = vector.broadcast %cst_6 : f32 to vector<8x1xf32>
    %11 = arith.mulf %9, %10 : vector<8x1xf32>
    %12 = arith.mulf %6, %6 : vector<8x1xf32>
    %13 = arith.subf %11, %12 : vector<8x1xf32>
    %c0_7 = arith.constant 0 : index
    %c0_8 = arith.constant 0 : index
    %14 = vector.load %arg2[%c0_7, %c0_8] : memref<8x1xf32, #tpu.memory_space<vmem>>, vector<8x1xf32>
    %cst_9 = arith.constant 1.000000e-03 : f32
    %15 = vector.broadcast %cst_9 : f32 to vector<8x1xf32>
    %16 = arith.addf %13, %15 : vector<8x1xf32>
    %17 = math.rsqrt %16 : vector<8x1xf32>
    %18 = arith.mulf %14, %17 : vector<8x1xf32>
    %c0_10 = arith.constant 0 : index
    %c0_11 = arith.constant 0 : index
    %19 = vector.load %arg3[%c0_10, %c0_11] : memref<8x1xf32, #tpu.memory_space<vmem>>, vector<8x1xf32>
    %20 = arith.mulf %6, %18 : vector<8x1xf32>
    %21 = arith.subf %19, %20 : vector<8x1xf32>
    %22 = vector.broadcast %18 : vector<8x1xf32> to vector<8x512xf32>
    %23 = arith.mulf %2, %22 : vector<8x512xf32>
    %24 = vector.broadcast %21 : vector<8x1xf32> to vector<8x512xf32>
    %25 = arith.addf %23, %24 : vector<8x512xf32>
    %cst_12 = arith.constant 0.000000e+00 : f32
    %26 = vector.broadcast %cst_12 : f32 to vector<8x512xf32>
    %27 = arith.maximumf %25, %26 : vector<8x512xf32>
    %c0_13 = arith.constant 0 : index
    %c0_14 = arith.constant 0 : index
    %28 = vector.load %arg4[%c0_13, %c0_14] : memref<8x512xf32, #tpu.memory_space<vmem>>, vector<8x512xf32>
    tpu.vector_store %arg4[%c0_13, %c0_14], %27 {strides = array<i32>} : memref<8x512xf32, #tpu.memory_space<vmem>>, vector<8x512xf32>,
    return
  }
}

</mosaic_0001>

<llo_original>
// kernel: tpu_custom_call.1
$region0: #{tpu_custom_call.1}
  #allocation0 [shape = 'u32[]', space=smem, size = 0x4, offset = 0x4, fixed_abs, tag = 'smem constant byte address 0x4 - core index']
  #allocation1 [shape = 'u32[72,128]{1,0:T(1,128)}', space=vmem, size = 0x9000, scoped, tag = 'internal scratch']
  %s0 = inlined_call_operand.vmem [shape: f32[8,36], index: 0, kind: input, shape index: {}]
  %s1 = inlined_call_operand.hbm [shape: f32[36,512], index: 1, kind: input, shape index: {}]
  %s2 = inlined_call_operand.vmem [shape: f32[8,1], index: 2, kind: input, shape index: {}]
  %s3 = inlined_call_operand.vmem [shape: f32[8,1], index: 3, kind: input, shape index: {}]
  %s4 = inlined_call_operand.hbm [shape: f32[8,512], index: 4, kind: output, shape index: {}]
  %s5 = sld [smem:[#allocation0]]
  $region30: #{tpu_custom_call.1} parent=0
    _
  %s7 = ssub.s32 1, %s5
  %s8 = scalar_select 0, %s7, %s5
  $region1: #{tpu_custom_call.1} parent=0
    #allocation2 [shape = 'u8[81920]{0}', space=vmem, size = 0x14000, scoped, tag = 'input window, operand 1, single buffered']
    #allocation3 [shape = 's32[1]{0}', space=sflag, size = 0x4, scoped, tag = 'scoped memory for tpu_custom_call.1']
    #allocation4 [shape = 's32[1]{0}', space=sflag, size = 0x4, scoped, tag = 'scoped memory for tpu_custom_call.1']
    #allocation5 [shape = 'u8[16384]{0}', space=vmem, size = 0x4000, scoped, tag = 'output window, operand 0, single buffered']
    %9 = vsyncpa [#allocation3], 0
    %10 = vsyncpa [#allocation4], 0
    // Predicated region
    $region2: #{tpu_custom_call.1} parent=1 // pred_check
      _
    $region3: #{tpu_custom_call.1} parent=1 // pred_check_branch
      %12 = sbr.rel (0) target = $region5
    $region4: #{tpu_custom_call.1} parent=1 // pred_region
      _
    $region5: #{tpu_custom_call.1} parent=1 // pred_fallthru
      _
    // Predicated region
    $region6: #{tpu_custom_call.1} parent=1 // pred_check
      _
    $region7: #{tpu_custom_call.1} parent=1 // pred_check_branch
      %14 = sbr.rel (0) target = $region9
    $region8: #{tpu_custom_call.1} parent=1 // pred_region
      %16 = vsyncadd [#allocation3], 0
      %s17 = sshll.u32 %s1, 4
      %s18 = int_to_ptr.hbm [resolvable:$true] %s17
      %s19 = sshll.u32 [#allocation2], 4
      %s20 = int_to_ptr.vmem [resolvable:$true] %s19
      %25 = dma.hbm_to_vmem [thread:$0]  %s18, 2560, %s20, [#allocation3], 512, 512, 32
    $region9: #{tpu_custom_call.1} parent=1 // pred_fallthru
      _
    // Predicated region
    $region10: #{tpu_custom_call.1} parent=1 // pred_check
      _
    $region11: #{tpu_custom_call.1} parent=1 // pred_check_branch
      %27 = sbr.rel (0) target = $region13
    $region12: #{tpu_custom_call.1} parent=1 // pred_region
      _
    $region13: #{tpu_custom_call.1} parent=1 // pred_fallthru
      _
    // Predicated region
    $region14: #{tpu_custom_call.1} parent=1 // pred_check
      _
    $region15: #{tpu_custom_call.1} parent=1 // pred_check_branch
      %29 = sbr.rel (0) target = $region17
    $region16: #{tpu_custom_call.1} parent=1 // pred_region
      _
    $region17: #{tpu_custom_call.1} parent=1 // pred_fallthru
      _
    // Predicated region
    $region18: #{tpu_custom_call.1} parent=1 // pred_check
      _
    $region19: #{tpu_custom_call.1} parent=1 // pred_check_branch
      %31 = sbr.rel (0) target = $region21
    $region20: #{tpu_custom_call.1} parent=1 // pred_region
      %33 = dma.done [#allocation3], 2560
    $region21: #{tpu_custom_call.1} parent=1 // pred_fallthru
      _
    %v34 = vld [vmem:[%s0] sm:$0xff]
    %v35 = vld [vmem:[#allocation2] sm:$0xff]
    %v36 = vld [vmem:[#allocation2 + $0x8] sm:$0xff]
    %v37 = vld [vmem:[#allocation2 + $0x10] sm:$0xff]
    %v38 = vld [vmem:[#allocation2 + $0x18] sm:$0xff]
    %v39 = vld [vmem:[#allocation2 + $0x20] sm:$0xff]
    %v40 = vld [vmem:[#allocation2 + $0x28] sm:$0xff]
    %v41 = vld [vmem:[#allocation2 + $0x30] sm:$0xff]
    %v42 = vld [vmem:[#allocation2 + $0x38] sm:$0xff]
    %v43 = vld [vmem:[#allocation2 + $0x40] sm:$0xff]
    %v44 = vld [vmem:[#allocation2 + $0x48] sm:$0xff]
    %v45 = vld [vmem:[#allocation2 + $0x50] sm:$0xff]
    %v46 = vld [vmem:[#allocation2 + $0x58] sm:$0xff]
    %v47 = vld [vmem:[#allocation2 + $0x60] sm:$0xff]
    %v48 = vld [vmem:[#allocation2 + $0x68] sm:$0xff]
    %v49 = vld [vmem:[#allocation2 + $0x70] sm:$0xff]
    %v50 = vld [vmem:[#allocation2 + $0x78] sm:$0xff]
    %v51 = vld [vmem:[#allocation2 + $0x80] sm:$0xf]
    %v52 = vld [vmem:[#allocation2 + $0x88] sm:$0xf]
    %v53 = vld [vmem:[#allocation2 + $0x90] sm:$0xf]
    %v54 = vld [vmem:[#allocation2 + $0x98] sm:$0xf]
    %vm55 = vcmask 293888
    %v57 = vsel %vm55, %v34, 0
    %vm59 = vcmask 1043456
    %v61 = vsel %vm59, %v51, 0
    %v64 = vsel %vm59, %v52, 0
    %v67 = vsel %vm59, %v53, 0
    %v70 = vsel %vm59, %v54, 0
    %72 = vmatpush.msra.mxu0 0.0
    %73 = vmatpush.msra.mxu0 0.0
    %74 = vmatpush.msra.mxu0 0.0
    %75 = vmatpush.msra.mxu0 0.0
    %76 = vmatpush.msra.mxu0 0.0
    %77 = vmatpush.msra.mxu0 0.0
    %78 = vmatpush.msra.mxu0 0.0
    %79 = vmatpush.msra.mxu0 0.0
    %80 = vmatpush.msra.mxu0 0.0
    %81 = vmatpush.msra.mxu0 0.0
    %82 = vmatpush.msra.mxu0 0.0
    %83 = vmatpush.msra.mxu0 %v61
    %84 = vmatpush.msra.mxu0 %v47
    %85 = vmatpush.msra.mxu0 %v43
    %86 = vmatpush.msra.mxu0 %v39
    %87 = vmatpush.msra.mxu0 %v35
    %88 = vmatmul.f32.gmra.mxu0 %v57
    %v89 = vpop.f32.mrf.mxu0
    %v90 = vadd.f32 0.0, %v89
    %91 = vdwg.mxu0
    %92 = vmatpush.msra.mxu0 0.0
    %93 = vmatpush.msra.mxu0 0.0
    %94 = vmatpush.msra.mxu0 0.0
    %95 = vmatpush.msra.mxu0 0.0
    %96 = vmatpush.msra.mxu0 0.0
    %97 = vmatpush.msra.mxu0 0.0
    %98 = vmatpush.msra.mxu0 0.0
    %99 = vmatpush.msra.mxu0 0.0
    %100 = vmatpush.msra.mxu0 0.0
    %101 = vmatpush.msra.mxu0 0.0
    %102 = vmatpush.msra.mxu0 0.0
    %103 = vmatpush.msra.mxu0 %v64
    %104 = vmatpush.msra.mxu0 %v48
    %105 = vmatpush.msra.mxu0 %v44
    %106 = vmatpush.msra.mxu0 %v40
    %107 = vmatpush.msra.mxu0 %v36
    %108 = vmatmul.f32.gmra.mxu0 %v57
    %v109 = vpop.f32.mrf.mxu0
    %v110 = vadd.f32 0.0, %v109
    %111 = vdwg.mxu0
    %112 = vmatpush.msra.mxu0 0.0
    %113 = vmatpush.msra.mxu0 0.0
    %114 = vmatpush.msra.mxu0 0.0
    %115 = vmatpush.msra.mxu0 0.0
    %116 = vmatpush.msra.mxu0 0.0
    %117 = vmatpush.msra.mxu0 0.0
    %118 = vmatpush.msra.mxu0 0.0
    %119 = vmatpush.msra.mxu0 0.0
    %120 = vmatpush.msra.mxu0 0.0
    %121 = vmatpush.msra.mxu0 0.0
    %122 = vmatpush.msra.mxu0 0.0
    %123 = vmatpush.msra.mxu0 %v67
    %124 = vmatpush.msra.mxu0 %v49
    %125 = vmatpush.msra.mxu0 %v45
    %126 = vmatpush.msra.mxu0 %v41
    %127 = vmatpush.msra.mxu0 %v37
    %128 = vmatmul.f32.gmra.mxu0 %v57
    %v129 = vpop.f32.mrf.mxu0
    %v130 = vadd.f32 0.0, %v129
    %131 = vdwg.mxu0
    %132 = vmatpush.msra.mxu0 0.0
    %133 = vmatpush.msra.mxu0 0.0
    %134 = vmatpush.msra.mxu0 0.0
    %135 = vmatpush.msra.mxu0 0.0
    %136 = vmatpush.msra.mxu0 0.0
    %137 = vmatpush.msra.mxu0 0.0
    %138 = vmatpush.msra.mxu0 0.0
    %139 = vmatpush.msra.mxu0 0.0
    %140 = vmatpush.msra.mxu0 0.0
    %141 = vmatpush.msra.mxu0 0.0
    %142 = vmatpush.msra.mxu0 0.0
    %143 = vmatpush.msra.mxu0 %v70
    %144 = vmatpush.msra.mxu0 %v50
    %145 = vmatpush.msra.mxu0 %v46
    %146 = vmatpush.msra.mxu0 %v42
    %147 = vmatpush.msra.mxu0 %v38
    %148 = vmatmul.f32.gmra.mxu0 %v57
    %v149 = vpop.f32.mrf.mxu0
    %v150 = vadd.f32 0.0, %v149
    %151 = vdwg.mxu0
    %v152 = vadd.f32 %v90, %v110
    %v153 = vadd.f32 %v152, %v130
    %v154 = vadd.f32 %v153, %v150
    %155 = vadd.xlane.f32.xlu0 %v154
    %v156 = vpop.xlane.xlu0 %155
    %v157 = vmul.f32 %v156, 0.001953125
    %v158 = vmul.f32 %v90, %v90
    %v159 = vmul.f32 %v110, %v110
    %v160 = vmul.f32 %v130, %v130
    %v161 = vmul.f32 %v150, %v150
    %v162 = vadd.f32 %v158, %v159
    %v163 = vadd.f32 %v162, %v160
    %v164 = vadd.f32 %v163, %v161
    %165 = vadd.xlane.f32.xlu0 %v164
    %v166 = vpop.xlane.xlu0 %165
    %v167 = vmul.f32 %v166, 0.001953125
    %v168 = vmul.f32 %v157, %v157
    %v169 = vsub.f32 %v167, %v168
    %v170 = vld [vmem:[%s2] sm:$0xff]
    %v171 = vadd.f32 %v169, 0.001
    %v172 = vrsqrt.pop %v171
    %v173 = vmul.f32 %v172, %v171
    %v174 = vmul.f32 %v173, %v172
    %v175 = vmul.f32 0.5, %v174
    %v176 = vsub.f32 1.5, %v175
    %v177 = vmul.f32 %v172, %v176
    %vm178 = vweird.f32 %v171
    %vm179 = vweird.f32 %v172
    %vm180 = vmor %vm178, %vm179
    %v181 = vsel %vm180, %v172, %v177
    %v182 = vmul.f32 %v170, %v181
    %v183 = vld [vmem:[%s3] sm:$0xff]
    %v184 = vmul.f32 %v157, %v182
    %v185 = vsub.f32 %v183, %v184
    %187 = vset.pattern.permute.xlu0 0
    %188 = vperm.xlu0 %187, %v182
    %v189 = vpop.permute.xlu0 %188
    %v191 = vmul.f32 %v90, %v189
    %v192 = vmul.f32 %v110, %v189
    %v193 = vmul.f32 %v130, %v189
    %v194 = vmul.f32 %v150, %v189
    %196 = vset.pattern.permute.xlu0 0
    %197 = vperm.xlu0 %196, %v185
    %v198 = vpop.permute.xlu0 %197
    %v200 = vadd.f32 %v191, %v198
    %v201 = vadd.f32 %v192, %v198
    %v202 = vadd.f32 %v193, %v198
    %v203 = vadd.f32 %v194, %v198
    %v204 = vmax.f32 %v200, 0.0
    %v205 = vmax.f32 %v201, 0.0
    %v206 = vmax.f32 %v202, 0.0
    %v207 = vmax.f32 %v203, 0.0
    %208 = vst [vmem:[#allocation5] sm:$0xff] %v204
    %209 = vst [vmem:[#allocation5 + $0x8] sm:$0xff] %v205
    %210 = vst [vmem:[#allocation5 + $0x10] sm:$0xff] %v206
    %211 = vst [vmem:[#allocation5 + $0x18] sm:$0xff] %v207
    // Predicated region
    $region22: #{tpu_custom_call.1} parent=1 // pred_check
      _
    $region23: #{tpu_custom_call.1} parent=1 // pred_check_branch
      %213 = sbr.rel (0) target = $region25
    $region24: #{tpu_custom_call.1} parent=1 // pred_region
      %215 = vsyncadd [#allocation4], 0
      %s217 = sshll.u32 [#allocation5], 4
      %s218 = int_to_ptr.vmem [resolvable:$true] %s217
      %s219 = sshll.u32 %s4, 4
      %s220 = int_to_ptr.hbm [resolvable:$true] %s219
      %222 = dma.vmem_to_hbm [thread:$0]  %s218, 512, %s220, [#allocation4]
    $region25: #{tpu_custom_call.1} parent=1 // pred_fallthru
      _
    // Predicated region
    $region26: #{tpu_custom_call.1} parent=1 // pred_check
      _
    $region27: #{tpu_custom_call.1} parent=1 // pred_check_branch
      %224 = sbr.rel (0) target = $region29
    $region28: #{tpu_custom_call.1} parent=1 // pred_region
      %226 = dma.done [#allocation4], 512
    $region29: #{tpu_custom_call.1} parent=1 // pred_fallthru
      _
    %227 = vsyncpa [#allocation3], 1
    %228 = vsyncpa [#allocation4], 1

</llo_original>
